<compile_context>
chip_gen: v5e
topology: v5e:2x2
jax: 0.10.0
libtpu: 0.0.40
codegen_flags: <defaults>
</compile_context>

<pallas_src>
import functools

import jax
import jax.numpy as jnp
from jax.experimental import pallas as pl
from jax.experimental.pallas import tpu as pltpu


def _diag_gaussian_mean_kernel(squash_mean, squash_distribution,
                               w_ref, p_ref, x_ref, mean_t_ref):
    """Computes one lane-dense (A, tb) tile of mean^T.

    w_ref     : (A, I)  linear weight (resident across the grid)
    p_ref     : (A, 4)  packed f32 params: col 0=bias, 1=asp_mean, 2=asp_mag
    x_ref     : (tb, I) batch tile of x in its natural layout
    mean_t_ref: (A, tb) output tile (batch on the 128-lane axis)
    """
    # Contract on x's last dim: W(A,I) . x(tb,I)^T -> (A, tb), f32 accumulation.
    mean_t = jax.lax.dot_general(
        w_ref[...], x_ref[...],
        dimension_numbers=(((1,), (1,)), ((), ())),
        preferred_element_type=jnp.float32)
    mean_t = mean_t + p_ref[:, 0:1]                    # bias, lane broadcast
    if squash_mean and (not squash_distribution):
        mean_t = p_ref[:, 1:2] + jnp.tanh(mean_t) * p_ref[:, 2:3]
    mean_t_ref[...] = mean_t.astype(mean_t_ref.dtype)


def diag_gaussian_net_forward(x, params, *, squash_mean=False,
                              squash_distribution=False, stddev=None,
                              block_batch=2048, mean_layout="BA",
                              broadcast_std=False):
    """Returns (loc, scale) of the CustomFixedNormal produced by forward().

    mean_layout:  "BA" -> loc shaped (B, A) like the PyTorch module;
                  "AB" -> lane-dense (A, B), no extra transpose pass.
    broadcast_std: if False (default) scale is the (A,) row, which broadcasts
                   against loc; if True it is materialized to loc's shape.
    """
    assert x.ndim == 2
    assert mean_layout in ("BA", "AB")
    B, I = x.shape
    w = params["w"]                                    # (A, I) nn.Linear weight
    A, Iw = w.shape
    assert Iw == I
    assert block_batch % 128 == 0, "block_batch must be a multiple of 128"

    # Matmul runs in x's dtype (no wrapper-side cast pass over x); the small
    # resident weight is cast once here so the kernel has no per-step casts.
    w_c = w.astype(x.dtype)

    # Pack the three (A,) per-action f32 vectors into one resident (A, 4) DMA.
    packed = jnp.stack(
        [params["b"], params["asp_mean"], params["asp_mag"],
         jnp.zeros_like(params["b"])], axis=1).astype(jnp.float32)

    if B <= block_batch:
        tb, num_blocks = B, 1                          # single full block
    else:
        tb, num_blocks = block_batch, pl.cdiv(B, block_batch)

    # Only split across v7x's two TensorCores when each block carries real
    # work (>= block_batch rows); a single block stays on one core.
    semantics = ("parallel",) if num_blocks > 1 else ("arbitrary",)

    # VMEM budget from actual buffers (double-buffered x + out, resident w/p).
    x_bytes = jnp.dtype(x.dtype).itemsize
    w_bytes = jnp.dtype(w_c.dtype).itemsize
    footprint = (2 * tb * I * x_bytes + 2 * A * tb * 4
                 + A * I * w_bytes + A * 4 * 4)
    vmem_limit = min(max(int(1.5 * footprint) + (4 << 20), 8 << 20), 64 << 20)

    kernel = functools.partial(_diag_gaussian_mean_kernel,
                               squash_mean, squash_distribution)

    mean_t = pl.pallas_call(
        kernel,
        out_shape=jax.ShapeDtypeStruct((A, B), jnp.float32),
        grid=(num_blocks,),
        in_specs=[
            pl.BlockSpec((A, I), lambda i: (0, 0)),    # weight, resident
            pl.BlockSpec((A, 4), lambda i: (0, 0)),    # packed params, resident
            pl.BlockSpec((tb, I), lambda i: (i, 0)),   # x tile, natural layout
        ],
        out_specs=pl.BlockSpec((A, tb), lambda i: (0, i)),
        compiler_params=pltpu.CompilerParams(
            dimension_semantics=semantics,
            vmem_limit_bytes=vmem_limit),
    )(w_c, packed, x)

    if mean_layout == "AB":
        mean = mean_t                                  # lane-dense, zero-copy
    else:
        mean = mean_t.T                                # (B, A) module semantics

    # Batch-invariant std head: one (A,) row (stable softplus via logaddexp).
    if stddev is None:
        std_row = jnp.maximum(jnp.logaddexp(params["std_bias"], 0.0),
                              params["min_std"]).astype(jnp.float32)
    else:
        std_row = jnp.full((A,), stddev, dtype=jnp.float32)

    if broadcast_std:
        if mean_layout == "AB":
            std = jnp.broadcast_to(std_row[:, None], (A, B))
        else:
            std = jnp.broadcast_to(std_row[None, :], (B, A))
    else:
        std = std_row                                  # broadcasts against loc
    return mean, std


def make_params(key, num_inputs, num_outputs, action_low, action_high,
                initial_stddev=1.0 / 3.0, min_stddev=0.0):
    """Deterministic parameter init mirroring DiagGaussianNet.__init__."""
    # orthogonal init with gain=0.5 for fc_mean.weight (shape (A, I)).
    a = jax.random.normal(key, (num_inputs, num_outputs), dtype=jnp.float32)
    q, r = jnp.linalg.qr(a)
    q = q * jnp.sign(jnp.diag(r))                      # sign fix, as torch does
    w = (0.5 * q).T                                    # (A, I)
    b = jnp.zeros((num_outputs,), jnp.float32)

    # softplus-inverse of initial_stddev (stddev_transform == softplus branch)
    init_before = jnp.log(jnp.exp(jnp.float32(initial_stddev)) - 1.0)
    std_bias = jnp.ones((num_outputs,), jnp.float32) * init_before
    min_std = jnp.ones((num_outputs,), jnp.float32) * jnp.float32(min_stddev)

    asp_mean = (action_low + action_high) / 2.0
    asp_mag = (action_high - action_low) / 2.0
    return dict(w=w, b=b, std_bias=std_bias, min_std=min_std,
                asp_mean=asp_mean.astype(jnp.float32),
                asp_mag=asp_mag.astype(jnp.float32))


def _ref_forward(x, params, squash_mean, squash_distribution):
    """Pure-JAX reference of the module's forward (f32 math)."""
    m = jnp.dot(x.astype(jnp.float32), params["w"].T,
                preferred_element_type=jnp.float32) + params["b"]
    if squash_mean and (not squash_distribution):
        m = params["asp_mean"] + jnp.tanh(m) * params["asp_mag"]
    std_row = jnp.maximum(jnp.log1p(jnp.exp(params["std_bias"])),
                          params["min_std"])
    return m, std_row


if __name__ == "__main__":
    key = jax.random.PRNGKey(0)
    k_x, k_w, k_odd = jax.random.split(key, 3)

    batch, num_inputs, num_outputs = 256, 32, 8
    action_low = -jnp.ones((num_outputs,), jnp.float32)
    action_high = jnp.ones((num_outputs,), jnp.float32)

    params = make_params(k_w, num_inputs, num_outputs, action_low, action_high)
    x = jax.random.normal(k_x, (batch, num_inputs), dtype=jnp.float32)
    ref_mean, ref_std_row = _ref_forward(x, params, False, False)

    # 1) default path: single full block, f32 matmul, std as an (A,) row.
    mean, std = diag_gaussian_net_forward(x, params)
    jax.block_until_ready((mean, std))
    assert mean.shape == (batch, num_outputs)
    assert std.shape == (num_outputs,)
    assert jnp.allclose(mean, ref_mean, atol=2e-3, rtol=2e-3)
    assert jnp.allclose(std, ref_std_row, atol=1e-5, rtol=1e-5)

    # 2) squash_mean path (tanh/asp epilogue inside the kernel).
    ref_mean_sq, _ = _ref_forward(x, params, True, False)
    mean_sq, _ = diag_gaussian_net_forward(
        x, params, squash_mean=True, squash_distribution=False)
    jax.block_until_ready(mean_sq)
    assert jnp.allclose(mean_sq, ref_mean_sq, atol=2e-3, rtol=2e-3)

    # 3) explicit stddev override (std head never computed), broadcast scale.
    mean_ov, std_ov = diag_gaussian_net_forward(
        x, params, stddev=0.5, broadcast_std=True)
    jax.block_until_ready((mean_ov, std_ov))
    assert std_ov.shape == (batch, num_outputs)
    assert jnp.allclose(std_ov, 0.5)
    assert jnp.allclose(mean_ov, ref_mean, atol=2e-3, rtol=2e-3)

    # 4) non-divisible batch with a real multi-block grid (partial last tile),
    #    lane-dense "AB" output layout (no wrapper transpose at all).
    x_odd = jax.random.normal(k_odd, (300, num_inputs), dtype=jnp.float32)
    ref_mean_odd, _ = _ref_forward(x_odd, params, False, False)
    mean_ab, std_row = diag_gaussian_net_forward(
        x_odd, params, block_batch=256, mean_layout="AB")
    jax.block_until_ready((mean_ab, std_row))
    assert mean_ab.shape == (num_outputs, 300)
    assert jnp.allclose(mean_ab.T, ref_mean_odd, atol=2e-3, rtol=2e-3)
    assert jnp.allclose(std_row, ref_std_row, atol=1e-5, rtol=1e-5)

    # 5) bf16 activations flow straight through (bf16 MXU, f32 accumulation).
    mean_bf, _ = diag_gaussian_net_forward(x.astype(jnp.bfloat16), params)
    jax.block_until_ready(mean_bf)
    assert jnp.allclose(mean_bf, ref_mean, atol=5e-2, rtol=5e-2)

    print("KERNEL_OK")
</pallas_src>

<mosaic_0001>
module attributes {stable_mosaic.version = 11 : i64} {
  func.func @_diag_gaussian_mean_kernel(%arg0: i32, %arg1: memref<8x32xf32, #tpu.memory_space<vmem>>, %arg2: memref<8x4xf32, #tpu.memory_space<vmem>>, %arg3: memref<256x32xf32, #tpu.memory_space<vmem>>, %arg4: memref<8x256xf32, #tpu.memory_space<vmem>>) attributes {dimension_semantics = [#tpu.dimension_semantics<arbitrary>], iteration_bounds = array<i64: 1>, scalar_prefetch = 0 : i64, scratch_operands = 0 : i64, tpu.core_type = #tpu.core_type<tc>, window_params = [{pipeline_mode = #tpu.pipeline_mode<synchronous>, transform_indices = @transform_0, window_bounds = array<i64: 8, 32>}, {pipeline_mode = #tpu.pipeline_mode<synchronous>, transform_indices = @transform_1, window_bounds = array<i64: 8, 4>}, {transform_indices = @transform_2, window_bounds = array<i64: 256, 32>}, {transform_indices = @transform_3, window_bounds = array<i64: 8, 256>}]} {
    %c0 = arith.constant 0 : index
    %c0_0 = arith.constant 0 : index
    %0 = vector.load %arg1[%c0, %c0_0] : memref<8x32xf32, #tpu.memory_space<vmem>>, vector<8x32xf32>
    %c0_1 = arith.constant 0 : index
    %c0_2 = arith.constant 0 : index
    %1 = vector.load %arg3[%c0_1, %c0_2] : memref<256x32xf32, #tpu.memory_space<vmem>>, vector<256x32xf32>
    %cst = arith.constant dense<0.000000e+00> : vector<8x256xf32>
    %2 = tpu.matmul %0, %1, %cst {dimension_numbers = #tpu.dot_dimension_numbers<[1], [1], [0], [0], [0, 0, 1, 0], [], []>} : vector<8x32xf32>, vector<256x32xf32>, vector<8x256xf32> -> vector<8x256xf32>
    %c0_3 = arith.constant 0 : index
    %c0_4 = arith.constant 0 : index
    %3 = vector.load %arg2[%c0_3, %c0_4] : memref<8x4xf32, #tpu.memory_space<vmem>>, vector<8x1xf32>
    %4 = vector.broadcast %3 : vector<8x1xf32> to vector<8x256xf32>
    %5 = arith.addf %2, %4 : vector<8x256xf32>
    %c0_5 = arith.constant 0 : index
    %c0_6 = arith.constant 0 : index
    %6 = vector.load %arg4[%c0_5, %c0_6] : memref<8x256xf32, #tpu.memory_space<vmem>>, vector<8x256xf32>
    tpu.vector_store %arg4[%c0_5, %c0_6], %5 {strides = array<i32>} : memref<8x256xf32, #tpu.memory_space<vmem>>, vector<8x256xf32>,
    return
  }
  func.func @transform_0(%arg0: i32) -> (i32, i32) {
    %c0_i32 = arith.constant 0 : i32
    %c0_i32_0 = arith.constant 0 : i32
    %c0_i32_1 = arith.constant 0 : i32
    return %c0_i32, %c0_i32_0 : i32, i32
  }
  func.func @transform_1(%arg0: i32) -> (i32, i32) {
    %c0_i32 = arith.constant 0 : i32
    %c0_i32_0 = arith.constant 0 : i32
    %c0_i32_1 = arith.constant 0 : i32
    return %c0_i32, %c0_i32_0 : i32, i32
  }
  func.func @transform_2(%arg0: i32) -> (i32, i32) {
    %c0_i32 = arith.constant 0 : i32
    %c0_i32_0 = arith.constant 0 : i32
    return %arg0, %c0_i32 : i32, i32
  }
  func.func @transform_3(%arg0: i32) -> (i32, i32) {
    %c0_i32 = arith.constant 0 : i32
    %c0_i32_0 = arith.constant 0 : i32
    return %c0_i32, %arg0 : i32, i32
  }
}

</mosaic_0001>

<llo_original>
// kernel: tpu_custom_call.1
$region0: #{tpu_custom_call.1}
  #allocation0 [shape = 'u32[]', space=smem, size = 0x4, offset = 0x4, fixed_abs, tag = 'smem constant byte address 0x4 - core index']
  #allocation1 [shape = 'u32[72,128]{1,0:T(1,128)}', space=vmem, size = 0x9000, scoped, tag = 'internal scratch']
  %s0 = inlined_call_operand.vmem [shape: f32[8,32], index: 0, kind: input, shape index: {}]
  %s1 = inlined_call_operand.vmem [shape: f32[8,4], index: 1, kind: input, shape index: {}]
  %s2 = inlined_call_operand.vmem [shape: f32[256,32], index: 2, kind: input, shape index: {}]
  %s3 = inlined_call_operand.hbm [shape: f32[8,256], index: 3, kind: output, shape index: {}]
  %s4 = sld [smem:[#allocation0]]
  $region22: #{tpu_custom_call.1} parent=0
    _
  %s6 = ssub.s32 1, %s4
  %s7 = scalar_select 0, %s6, %s4
  $region1: #{tpu_custom_call.1} parent=0
    #allocation2 [shape = 'u8[8192]{0}', space=vmem, size = 0x2000, scoped, tag = 'output window, operand 0, single buffered']
    #allocation3 [shape = 's32[1]{0}', space=sflag, size = 0x4, scoped, tag = 'scoped memory for tpu_custom_call.1']
    %8 = vsyncpa [#allocation3], 0
    // Predicated region
    $region2: #{tpu_custom_call.1} parent=1 // pred_check
      _
    $region3: #{tpu_custom_call.1} parent=1 // pred_check_branch
      %10 = sbr.rel (0) target = $region5
    $region4: #{tpu_custom_call.1} parent=1 // pred_region
      _
    $region5: #{tpu_custom_call.1} parent=1 // pred_fallthru
      _
    // Predicated region
    $region6: #{tpu_custom_call.1} parent=1 // pred_check
      _
    $region7: #{tpu_custom_call.1} parent=1 // pred_check_branch
      %12 = sbr.rel (0) target = $region9
    $region8: #{tpu_custom_call.1} parent=1 // pred_region
      _
    $region9: #{tpu_custom_call.1} parent=1 // pred_fallthru
      _
    // Predicated region
    $region10: #{tpu_custom_call.1} parent=1 // pred_check
      _
    $region11: #{tpu_custom_call.1} parent=1 // pred_check_branch
      %14 = sbr.rel (0) target = $region13
    $region12: #{tpu_custom_call.1} parent=1 // pred_region
      _
    $region13: #{tpu_custom_call.1} parent=1 // pred_fallthru
      _
    %v15 = vld [vmem:[%s0] sm:$0xff]
    %v16 = vld [vmem:[%s2] sm:$0xff]
    %v17 = vld [vmem:[%s2 + $0x8] sm:$0xff]
    %v18 = vld [vmem:[%s2 + $0x10] sm:$0xff]
    %v19 = vld [vmem:[%s2 + $0x18] sm:$0xff]
    %v20 = vld [vmem:[%s2 + $0x20] sm:$0xff]
    %v21 = vld [vmem:[%s2 + $0x28] sm:$0xff]
    %v22 = vld [vmem:[%s2 + $0x30] sm:$0xff]
    %v23 = vld [vmem:[%s2 + $0x38] sm:$0xff]
    %v24 = vld [vmem:[%s2 + $0x40] sm:$0xff]
    %v25 = vld [vmem:[%s2 + $0x48] sm:$0xff]
    %v26 = vld [vmem:[%s2 + $0x50] sm:$0xff]
    %v27 = vld [vmem:[%s2 + $0x58] sm:$0xff]
    %v28 = vld [vmem:[%s2 + $0x60] sm:$0xff]
    %v29 = vld [vmem:[%s2 + $0x68] sm:$0xff]
    %v30 = vld [vmem:[%s2 + $0x70] sm:$0xff]
    %v31 = vld [vmem:[%s2 + $0x78] sm:$0xff]
    %v32 = vld [vmem:[%s2 + $0x80] sm:$0xff]
    %v33 = vld [vmem:[%s2 + $0x88] sm:$0xff]
    %v34 = vld [vmem:[%s2 + $0x90] sm:$0xff]
    %v35 = vld [vmem:[%s2 + $0x98] sm:$0xff]
    %v36 = vld [vmem:[%s2 + $0xa0] sm:$0xff]
    %v37 = vld [vmem:[%s2 + $0xa8] sm:$0xff]
    %v38 = vld [vmem:[%s2 + $0xb0] sm:$0xff]
    %v39 = vld [vmem:[%s2 + $0xb8] sm:$0xff]
    %v40 = vld [vmem:[%s2 + $0xc0] sm:$0xff]
    %v41 = vld [vmem:[%s2 + $0xc8] sm:$0xff]
    %v42 = vld [vmem:[%s2 + $0xd0] sm:$0xff]
    %v43 = vld [vmem:[%s2 + $0xd8] sm:$0xff]
    %v44 = vld [vmem:[%s2 + $0xe0] sm:$0xff]
    %v45 = vld [vmem:[%s2 + $0xe8] sm:$0xff]
    %v46 = vld [vmem:[%s2 + $0xf0] sm:$0xff]
    %v47 = vld [vmem:[%s2 + $0xf8] sm:$0xff]
    %v48 = vld [vmem:[%s1] sm:$0xff]
    %50 = vset.pattern.permute.xlu0 0
    %51 = vperm.xlu0 %50, %v48
    %v52 = vpop.permute.xlu0 %51
    %vm54 = vcmask 261120
    %v56 = vsel %vm54, %v15, 0
    %v59 = vsel %vm54, %v16, 0
    %v62 = vsel %vm54, %v17, 0
    %v65 = vsel %vm54, %v18, 0
    %v68 = vsel %vm54, %v19, 0
    %v71 = vsel %vm54, %v20, 0
    %v74 = vsel %vm54, %v21, 0
    %v77 = vsel %vm54, %v22, 0
    %v80 = vsel %vm54, %v23, 0
    %v83 = vsel %vm54, %v24, 0
    %v86 = vsel %vm54, %v25, 0
    %v89 = vsel %vm54, %v26, 0
    %v92 = vsel %vm54, %v27, 0
    %v95 = vsel %vm54, %v28, 0
    %v98 = vsel %vm54, %v29, 0
    %v101 = vsel %vm54, %v30, 0
    %v104 = vsel %vm54, %v31, 0
    %v107 = vsel %vm54, %v32, 0
    %v110 = vsel %vm54, %v33, 0
    %v113 = vsel %vm54, %v34, 0
    %v116 = vsel %vm54, %v35, 0
    %v119 = vsel %vm54, %v36, 0
    %v122 = vsel %vm54, %v37, 0
    %v125 = vsel %vm54, %v38, 0
    %v128 = vsel %vm54, %v39, 0
    %v131 = vsel %vm54, %v40, 0
    %v134 = vsel %vm54, %v41, 0
    %v137 = vsel %vm54, %v42, 0
    %v140 = vsel %vm54, %v43, 0
    %v143 = vsel %vm54, %v44, 0
    %v146 = vsel %vm54, %v45, 0
    %v149 = vsel %vm54, %v46, 0
    %v152 = vsel %vm54, %v47, 0
    %154 = vmatpush.xpose.msra.mxu0 %v104
    %155 = vmatpush.xpose.msra.mxu0 %v101
    %156 = vmatpush.xpose.msra.mxu0 %v98
    %157 = vmatpush.xpose.msra.mxu0 %v95
    %158 = vmatpush.xpose.msra.mxu0 %v92
    %159 = vmatpush.xpose.msra.mxu0 %v89
    %160 = vmatpush.xpose.msra.mxu0 %v86
    %161 = vmatpush.xpose.msra.mxu0 %v83
    %162 = vmatpush.xpose.msra.mxu0 %v80
    %163 = vmatpush.xpose.msra.mxu0 %v77
    %164 = vmatpush.xpose.msra.mxu0 %v74
    %165 = vmatpush.xpose.msra.mxu0 %v71
    %166 = vmatpush.xpose.msra.mxu0 %v68
    %167 = vmatpush.xpose.msra.mxu0 %v65
    %168 = vmatpush.xpose.msra.mxu0 %v62
    %169 = vmatpush.xpose.msra.mxu0 %v59
    %170 = vmatmul.f32.gmra.mxu0 %v56
    %v171 = vpop.f32.mrf.mxu0
    %v172 = vadd.f32 %v52, %v171
    %173 = vdwg.mxu0
    %174 = vmatpush.xpose.msra.mxu0 %v152
    %175 = vmatpush.xpose.msra.mxu0 %v149
    %176 = vmatpush.xpose.msra.mxu0 %v146
    %177 = vmatpush.xpose.msra.mxu0 %v143
    %178 = vmatpush.xpose.msra.mxu0 %v140
    %179 = vmatpush.xpose.msra.mxu0 %v137
    %180 = vmatpush.xpose.msra.mxu0 %v134
    %181 = vmatpush.xpose.msra.mxu0 %v131
    %182 = vmatpush.xpose.msra.mxu0 %v128
    %183 = vmatpush.xpose.msra.mxu0 %v125
    %184 = vmatpush.xpose.msra.mxu0 %v122
    %185 = vmatpush.xpose.msra.mxu0 %v119
    %186 = vmatpush.xpose.msra.mxu0 %v116
    %187 = vmatpush.xpose.msra.mxu0 %v113
    %188 = vmatpush.xpose.msra.mxu0 %v110
    %189 = vmatpush.xpose.msra.mxu0 %v107
    %190 = vmatmul.f32.gmra.mxu0 %v56
    %v191 = vpop.f32.mrf.mxu0
    %v192 = vadd.f32 %v52, %v191
    %193 = vdwg.mxu0
    %194 = vst [vmem:[#allocation2] sm:$0xff] %v172
    %195 = vst [vmem:[#allocation2 + $0x8] sm:$0xff] %v192
    // Predicated region
    $region14: #{tpu_custom_call.1} parent=1 // pred_check
      _
    $region15: #{tpu_custom_call.1} parent=1 // pred_check_branch
      %197 = sbr.rel (0) target = $region17
    $region16: #{tpu_custom_call.1} parent=1 // pred_region
      %199 = vsyncadd [#allocation3], 0
      %s201 = sshll.u32 [#allocation2], 4
      %s202 = int_to_ptr.vmem [resolvable:$true] %s201
      %s203 = sshll.u32 %s3, 4
      %s204 = int_to_ptr.hbm [resolvable:$true] %s203
      %206 = dma.vmem_to_hbm [thread:$0]  %s202, 256, %s204, [#allocation3]
    $region17: #{tpu_custom_call.1} parent=1 // pred_fallthru
      _
    // Predicated region
    $region18: #{tpu_custom_call.1} parent=1 // pred_check
      _
    $region19: #{tpu_custom_call.1} parent=1 // pred_check_branch
      %208 = sbr.rel (0) target = $region21
    $region20: #{tpu_custom_call.1} parent=1 // pred_region
      %210 = dma.done [#allocation3], 256
    $region21: #{tpu_custom_call.1} parent=1 // pred_fallthru
      _
    %211 = vsyncpa [#allocation3], 1

</llo_original>
